<compile_context>
chip_gen: v5e
topology: v5e:2x2
jax: 0.10.0
libtpu: 0.0.40
codegen_flags: <defaults>
</compile_context>

<pallas_src>
import functools

import jax
import jax.numpy as jnp
import numpy as np
from jax.experimental import pallas as pl
from jax.experimental.pallas import tpu as pltpu

H_DIM = 32             # config.h_dim
K_EIG = 8              # eigenpairs per protein
PROP_TIME_SCALE = 1.0  # config.propagation_time_scale
APPLY_BAND_FILTER = True
BN_EPS = 1e-5
DEFAULT_TILE_ROWS = 256


def _round_up(x, m):
    return ((x + m - 1) // m) * m


# ---------------------------------------------------------------------------
# Kernel A: spectral coefficients  (per protein, grid=(P,))
#   h_spec_scaled = band_filter * exp(-lam * t) * (Phi_inv @ h)     -> (K, H)
# ---------------------------------------------------------------------------
def _spectral_stage1_kernel(evecs_inv_ref, hh_ref, scale_ref, out_ref):
    h_spec = jnp.dot(evecs_inv_ref[0], hh_ref[0],
                     preferred_element_type=jnp.float32)          # (K, H)
    out_ref[0] = scale_ref[0] * h_spec


def spectral_stage1(evecs_inv_p, hh_p, scale_p):
    P, K, NVp = evecs_inv_p.shape
    H = hh_p.shape[-1]
    return pl.pallas_call(
        _spectral_stage1_kernel,
        grid=(P,),
        in_specs=[
            pl.BlockSpec((1, K, NVp), lambda p: (p, 0, 0)),
            pl.BlockSpec((1, NVp, H), lambda p: (p, 0, 0)),
            pl.BlockSpec((1, K, H), lambda p: (p, 0, 0)),
        ],
        out_specs=pl.BlockSpec((1, K, H), lambda p: (p, 0, 0)),
        out_shape=jax.ShapeDtypeStruct((P, K, H), jnp.float32),
        compiler_params=pltpu.CompilerParams(dimension_semantics=("parallel",)),
    )(evecs_inv_p, hh_p, scale_p)


# ---------------------------------------------------------------------------
# Kernel B: fused per-row-tile forward  (grid=(P, row_tiles))
#   spectral reconstruction + grad features + residual MLP head.
# ---------------------------------------------------------------------------
def _fused_tile_kernel(gx_ref, gy_ref, htile_ref, hbf_ref, evecs_ref, hspec_ref,
                       wg_ref, s_ref, w1_ref, b1_ref, w2_ref, b2_ref, out_ref,
                       *, h_dim):
    H = h_dim
    h_tile = htile_ref[0]                                          # (tile_r, H)  f32

    # spectral propagation for this row tile:  Phi_tile @ h_spec_scaled
    h_prop = jnp.dot(evecs_ref[0], hspec_ref[0],
                     preferred_element_type=jnp.float32)           # (tile_r, H)

    # surface gradients: row strip of dense grad operators @ full h  (bf16 MXU)
    hh_bf = hbf_ref[0]                                             # (NVp, H) bf16, resident
    gradx = jnp.clip(jnp.dot(gx_ref[0], hh_bf,
                             preferred_element_type=jnp.float32), -1.0, 1.0)
    grady = jnp.clip(jnp.dot(gy_ref[0], hh_bf,
                             preferred_element_type=jnp.float32), -1.0, 1.0)

    # grad_mlp / grad_mlp2 share inputs: one packed weight [Wg^T | Wg2^T] (H, 2H)
    wg = wg_ref[...]                                               # (H, 2H) bf16
    rx = jnp.dot(gradx.astype(jnp.bfloat16), wg,
                 preferred_element_type=jnp.float32)               # [gx1 | gx2]
    ry = jnp.dot(grady.astype(jnp.bfloat16), wg,
                 preferred_element_type=jnp.float32)               # [gy1 | gy2]
    # cross(grad_vec, gradp_vec) . n  ==  (gx1*gy2 - gx2*gy1) * ((bx x by) . n)
    h_grad = (rx[:, :H] * ry[:, H:] - rx[:, H:] * ry[:, :H]) * s_ref[0]   # (tile_r, H)

    # residual MLP head; BN(eval) folded into w/b, dropout = identity.
    # W1 consumed as three (H, 2H) slabs -> no (tile_r, 3H) concat materialized.
    w1 = w1_ref[...]                                               # (3H, 2H) bf16
    y = (jnp.dot(h_tile.astype(jnp.bfloat16), w1[:H],
                 preferred_element_type=jnp.float32)
         + jnp.dot(h_prop.astype(jnp.bfloat16), w1[H:2 * H],
                   preferred_element_type=jnp.float32)
         + jnp.dot(h_grad.astype(jnp.bfloat16), w1[2 * H:],
                   preferred_element_type=jnp.float32)
         + b1_ref[...])
    y = jnp.maximum(y, 0.0).astype(jnp.bfloat16)
    y = jnp.dot(y, w2_ref[...], preferred_element_type=jnp.float32) + b2_ref[...]
    out_ref[0] = h_tile + y


def fused_forward_tiles(gx_p, gy_p, hh_p, hh_bf_p, evecs_p, hspec_p, wg_pair,
                        s_p, w1f, b1f, w2f, b2f, tile_r):
    P, NVp, _ = gx_p.shape
    H = hh_p.shape[-1]
    K = evecs_p.shape[-1]
    NT = NVp // tile_r
    kern = functools.partial(_fused_tile_kernel, h_dim=H)
    rep2 = lambda shape: pl.BlockSpec(shape, lambda p, t: (0, 0))
    return pl.pallas_call(
        kern,
        grid=(P, NT),
        in_specs=[
            pl.BlockSpec((1, tile_r, NVp), lambda p, t: (p, t, 0)),   # gx row strip (bf16)
            pl.BlockSpec((1, tile_r, NVp), lambda p, t: (p, t, 0)),   # gy row strip (bf16)
            pl.BlockSpec((1, tile_r, H), lambda p, t: (p, t, 0)),     # h row tile (f32)
            pl.BlockSpec((1, NVp, H), lambda p, t: (p, 0, 0)),        # h (bf16, resident/protein)
            pl.BlockSpec((1, tile_r, K), lambda p, t: (p, t, 0)),     # eigenvectors tile
            pl.BlockSpec((1, K, H), lambda p, t: (p, 0, 0)),          # scaled spectrum
            rep2((H, 2 * H)),                                         # [Wg^T | Wg2^T] (bf16)
            pl.BlockSpec((1, tile_r, 1), lambda p, t: (p, t, 0)),     # (bx x by) . n
            rep2((3 * H, 2 * H)),                                     # W1 (BN folded, bf16)
            rep2((1, 2 * H)),                                         # b1 (BN folded)
            rep2((2 * H, H)),                                         # W2 (BN folded, bf16)
            rep2((1, H)),                                             # b2 (BN folded)
        ],
        out_specs=pl.BlockSpec((1, tile_r, H), lambda p, t: (p, t, 0)),
        out_shape=jax.ShapeDtypeStruct((P, NVp, H), jnp.float32),
        compiler_params=pltpu.CompilerParams(
            dimension_semantics=("parallel", "parallel")),
    )(gx_p, gy_p, hh_p, hh_bf_p, evecs_p, hspec_p, wg_pair, s_p,
      w1f, b1f, w2f, b2f)


# ---------------------------------------------------------------------------
# Parameter init (deterministic, mirrors the PyTorch __init__ shapes)
# ---------------------------------------------------------------------------
def init_params(key, h_dim):
    ks = jax.random.split(key, 12)
    p = {}
    p["propagation_time"] = 1.0 + jax.random.normal(ks[0], (h_dim,), jnp.float32)
    p["band_e_mean"] = 0.1 + 0.1 * jax.random.normal(ks[1], (h_dim,), jnp.float32)
    p["band_e_std"] = 0.1 + 0.1 * jax.random.normal(ks[2], (h_dim,), jnp.float32)
    lim = 1.0 / np.sqrt(h_dim)
    p["Wg"] = jax.random.uniform(ks[3], (h_dim, h_dim), jnp.float32, -lim, lim)   # [out, in]
    p["Wg2"] = jax.random.uniform(ks[4], (h_dim, h_dim), jnp.float32, -lim, lim)
    lim1 = 1.0 / np.sqrt(3 * h_dim)
    p["W1"] = jax.random.uniform(ks[5], (2 * h_dim, 3 * h_dim), jnp.float32, -lim1, lim1)
    p["b1"] = jax.random.uniform(ks[6], (2 * h_dim,), jnp.float32, -lim1, lim1)
    lim2 = 1.0 / np.sqrt(2 * h_dim)
    p["W2"] = jax.random.uniform(ks[7], (h_dim, 2 * h_dim), jnp.float32, -lim2, lim2)
    p["b2"] = jax.random.uniform(ks[8], (h_dim,), jnp.float32, -lim2, lim2)
    # BatchNorm1d affine params + running stats (eval mode)
    p["bn1_gamma"] = 1.0 + 0.1 * jax.random.normal(ks[9], (2 * h_dim,), jnp.float32)
    p["bn1_beta"] = 0.1 * jax.random.normal(ks[10], (2 * h_dim,), jnp.float32)
    p["bn1_mean"] = jnp.zeros((2 * h_dim,), jnp.float32)
    p["bn1_var"] = jnp.ones((2 * h_dim,), jnp.float32)
    p["bn2_gamma"] = 1.0 + 0.1 * jax.random.normal(ks[11], (h_dim,), jnp.float32)
    p["bn2_beta"] = jnp.zeros((h_dim,), jnp.float32)
    p["bn2_mean"] = jnp.zeros((h_dim,), jnp.float32)
    p["bn2_var"] = jnp.ones((h_dim,), jnp.float32)
    return p


# ---------------------------------------------------------------------------
# Full forward (Pallas path)
# ---------------------------------------------------------------------------
def propagation_layer_forward(params, h, num_verts, eigs, grad_op, grad_basis,
                              vnormals, tile_rows=DEFAULT_TILE_ROWS):
    N, H = h.shape
    P = len(num_verts)

    # padded per-protein geometry: NVp rows, row tile tile_r (tile_r | NVp)
    max_nv = max(int(v) for v in num_verts)
    nvp0 = _round_up(max_nv, 8)
    tile_r = max(8, min(_round_up(int(tile_rows), 8), nvp0))
    NVp = _round_up(nvp0, tile_r)

    # parameter clamps (torch does them in-place under no_grad before use)
    prop_time = jnp.clip(params["propagation_time"], 1e-6, None)
    band_mean = jnp.clip(params["band_e_mean"], 1e-6, 0.3)
    band_std = jnp.clip(params["band_e_std"], 0.05, None)
    time = PROP_TIME_SCALE * prop_time                           # (H,)

    # fold eval-mode BatchNorm into the Linear layers; Dropout = identity in eval
    s1 = params["bn1_gamma"] / jnp.sqrt(params["bn1_var"] + BN_EPS)
    t1 = params["bn1_beta"] - params["bn1_mean"] * s1
    s2 = params["bn2_gamma"] / jnp.sqrt(params["bn2_var"] + BN_EPS)
    t2 = params["bn2_beta"] - params["bn2_mean"] * s2
    w1f = (params["W1"].T * s1[None, :]).astype(jnp.bfloat16)    # (3H, 2H)
    b1f = (params["b1"] * s1 + t1).reshape(1, -1)
    w2f = (params["W2"].T * s2[None, :]).astype(jnp.bfloat16)    # (2H, H)
    b2f = (params["b2"] * s2 + t2).reshape(1, -1)

    # grad_mlp / grad_mlp2 packed side-by-side (no zero blocks):
    # gradx @ [Wg^T | Wg2^T] = [gx1 | gx2],  grady @ [...] = [gy1 | gy2]
    wg_pair = jnp.concatenate([params["Wg"].T, params["Wg2"].T],
                              axis=1).astype(jnp.bfloat16)        # (H, 2H)

    # per-vertex geometric scalar (basis_x x basis_y) . normal  (h-independent)
    s_geom = jnp.sum(jnp.cross(grad_basis[:, :3], grad_basis[:, 3:]) * vnormals,
                     axis=-1)                                    # (N,)

    # pad & stack per-protein inputs (glue)
    offsets = np.concatenate([[0], np.cumsum(num_verts)]).astype(int)
    hh_l, evecs_l, evinv_l, scale_l, gx_l, gy_l, s_l = [], [], [], [], [], [], []
    for idx, nv in enumerate(num_verts):
        nv = int(nv)
        s_, e_ = int(offsets[idx]), int(offsets[idx + 1])
        pad = NVp - nv
        hh_l.append(jnp.pad(h[s_:e_], ((0, pad), (0, 0))))
        LB = eigs[idx]
        evals = LB[0]                                            # (K,)
        evecs = LB[1:1 + nv]                                     # (nv, K)
        evinv = LB[1 + nv:].T                                    # (K, nv)
        evecs_l.append(jnp.pad(evecs, ((0, pad), (0, 0))))
        evinv_l.append(jnp.pad(evinv, ((0, 0), (0, pad))))
        band = (jnp.exp(-(band_mean[None, :] - evals[:, None]) ** 2
                        / (2.0 * band_std[None, :] ** 2))
                if APPLY_BAND_FILTER
                else jnp.ones((evals.shape[0], H), jnp.float32))
        scale_l.append(band * jnp.exp(-evals[:, None] * time[None, :]))   # (K, H)

        vx, vy, rows, cols = grad_op[idx]
        ri, ci = rows.astype(jnp.int32), cols.astype(jnp.int32)
        # TODO(synk): sparse COO grad ops are densified here (duplicates sum, like
        # torch.sparse.mm); a gather/segment-sum Pallas kernel would avoid O(nv^2).
        gx_l.append(jnp.zeros((NVp, NVp), jnp.float32).at[ri, ci].add(vx)
                    .astype(jnp.bfloat16))
        gy_l.append(jnp.zeros((NVp, NVp), jnp.float32).at[ri, ci].add(vy)
                    .astype(jnp.bfloat16))
        s_l.append(jnp.pad(s_geom[s_:e_], (0, pad)).reshape(NVp, 1))

    hh_p = jnp.stack(hh_l)                      # (P, NVp, H)   f32
    hh_bf_p = hh_p.astype(jnp.bfloat16)         # (P, NVp, H)   bf16 (grad-op operand)
    evecs_p = jnp.stack(evecs_l)                # (P, NVp, K)   f32
    evinv_p = jnp.stack(evinv_l)                # (P, K, NVp)   f32
    scale_p = jnp.stack(scale_l)                # (P, K, H)     f32
    gx_p = jnp.stack(gx_l)                      # (P, NVp, NVp) bf16
    gy_p = jnp.stack(gy_l)                      # (P, NVp, NVp) bf16
    s_p = jnp.stack(s_l)                        # (P, NVp, 1)   f32

    hspec_p = spectral_stage1(evinv_p, hh_p, scale_p)            # (P, K, H)
    out_p = fused_forward_tiles(gx_p, gy_p, hh_p, hh_bf_p, evecs_p, hspec_p,
                                wg_pair, s_p, w1f, b1f, w2f, b2f, tile_r)

    # drop the padded rows, back to packed (N, H)
    return jnp.concatenate(
        [out_p[i, :int(nv)] for i, nv in enumerate(num_verts)], axis=0)


# ---------------------------------------------------------------------------
# Pure-JAX reference (mirrors the PyTorch forward in eval mode)
# ---------------------------------------------------------------------------
def reference_forward(params, h, num_verts, eigs, grad_op, grad_basis, vnormals):
    with jax.default_matmul_precision("highest"):
        prop_time = jnp.clip(params["propagation_time"], 1e-6, None)
        band_mean = jnp.clip(params["band_e_mean"], 1e-6, 0.3)
        band_std = jnp.clip(params["band_e_std"], 0.05, None)
        time = PROP_TIME_SCALE * prop_time
        offsets = np.concatenate([[0], np.cumsum(num_verts)])
        props, grads = [], []
        for idx, nv in enumerate(num_verts):
            s, e = int(offsets[idx]), int(offsets[idx + 1])
            hh = h[s:e]
            LB = eigs[idx]
            evals, evecs, evecs_inv = LB[0], LB[1:1 + nv], LB[1 + nv:].T
            h_spec = evecs_inv @ hh
            band = (jnp.exp(-(band_mean[None, :] - evals[:, None]) ** 2
                            / (2.0 * band_std[None, :] ** 2))
                    if APPLY_BAND_FILTER else 1.0)
            coeff = jnp.exp(-evals[:, None] * time[None, :])
            props.append(evecs @ (band * coeff * h_spec))

            vx, vy, rows, cols = grad_op[idx]
            ri, ci = rows.astype(jnp.int32), cols.astype(jnp.int32)
            gx = jnp.zeros((nv, nv), jnp.float32).at[ri, ci].add(vx)
            gy = jnp.zeros((nv, nv), jnp.float32).at[ri, ci].add(vy)
            gradx = jnp.clip(gx @ hh, -1.0, 1.0)
            grady = jnp.clip(gy @ hh, -1.0, 1.0)
            gbx, gby = grad_basis[s:e, :3], grad_basis[s:e, 3:]
            gx1, gy1 = gradx @ params["Wg"].T, grady @ params["Wg"].T
            gx2, gy2 = gradx @ params["Wg2"].T, grady @ params["Wg2"].T
            grad_vec = gx1[:, :, None] * gbx[:, None, :] + gy1[:, :, None] * gby[:, None, :]
            gradp_vec = gx2[:, :, None] * gbx[:, None, :] + gy2[:, :, None] * gby[:, None, :]
            cross = jnp.cross(grad_vec, gradp_vec, axis=-1)
            vn = jnp.broadcast_to(vnormals[s:e][:, None, :], cross.shape)
            grads.append(jnp.einsum('ijk,ijk->ij', cross, vn))
        x = jnp.concatenate([h, jnp.concatenate(props, 0), jnp.concatenate(grads, 0)], -1)
        y = x @ params["W1"].T + params["b1"]
        y = (y - params["bn1_mean"]) / jnp.sqrt(params["bn1_var"] + BN_EPS) \
            * params["bn1_gamma"] + params["bn1_beta"]
        y = jnp.maximum(y, 0.0)
        y = y @ params["W2"].T + params["b2"]
        y = (y - params["bn2_mean"]) / jnp.sqrt(params["bn2_var"] + BN_EPS) \
            * params["bn2_gamma"] + params["bn2_beta"]
        return h + y


if __name__ == "__main__":
    key = jax.random.PRNGKey(0)
    kp, kd = jax.random.split(key)
    params = init_params(kp, H_DIM)

    num_verts = [48, 36]                 # different sizes -> exercises padding
    N = int(sum(num_verts))
    keys = jax.random.split(kd, 8)
    h = jax.random.normal(keys[0], (N, H_DIM), jnp.float32)
    grad_basis = jax.random.normal(keys[1], (N, 6), jnp.float32)
    vn = jax.random.normal(keys[2], (N, 3), jnp.float32)
    vnormals = vn / jnp.linalg.norm(vn, axis=-1, keepdims=True)

    eigs, grad_op = [], []
    for i, nv in enumerate(num_verts):
        ke = jax.random.split(keys[3 + i], 4)
        evals = jnp.sort(jnp.abs(jax.random.normal(ke[0], (K_EIG,), jnp.float32)))
        evecs = jax.random.normal(ke[1], (nv, K_EIG), jnp.float32) / np.sqrt(nv)
        evecs_inv_rows = jax.random.normal(ke[2], (nv, K_EIG), jnp.float32) / np.sqrt(nv)
        eigs.append(jnp.concatenate([evals[None, :], evecs, evecs_inv_rows], axis=0))
        nnz = 3 * nv
        kg = jax.random.split(ke[3], 3)
        rows = jax.random.randint(kg[0], (nnz,), 0, nv).astype(jnp.float32)
        cols = jax.random.randint(kg[1], (nnz,), 0, nv).astype(jnp.float32)
        vals = jax.random.normal(kg[2], (2, nnz), jnp.float32)
        grad_op.append(jnp.stack([vals[0], vals[1], rows, cols], axis=0))

    # small tile in the demo so the multi-row-tile grid path is exercised
    out = propagation_layer_forward(params, h, num_verts, eigs, grad_op,
                                    grad_basis, vnormals, tile_rows=32)
    out = jax.block_until_ready(out)

    ref = reference_forward(params, h, num_verts, eigs, grad_op, grad_basis, vnormals)
    np.testing.assert_allclose(np.asarray(out), np.asarray(ref), rtol=2e-2, atol=2e-2)
    print("KERNEL_OK")
</pallas_src>

<mosaic_0001>
module attributes {stable_mosaic.version = 11 : i64} {
  func.func @_spectral_stage1_kernel(%arg0: i32, %arg1: memref<1x8x64xf32, #tpu.memory_space<vmem>>, %arg2: memref<1x64x32xf32, #tpu.memory_space<vmem>>, %arg3: memref<1x8x32xf32, #tpu.memory_space<vmem>>, %arg4: memref<1x8x32xf32, #tpu.memory_space<vmem>>) attributes {dimension_semantics = [#tpu.dimension_semantics<parallel>], iteration_bounds = array<i64: 2>, scalar_prefetch = 0 : i64, scratch_operands = 0 : i64, tpu.core_type = #tpu.core_type<tc>, window_params = [{transform_indices = @transform_0, window_bounds = array<i64: 1, 8, 64>}, {transform_indices = @transform_1, window_bounds = array<i64: 1, 64, 32>}, {transform_indices = @transform_2, window_bounds = array<i64: 1, 8, 32>}, {transform_indices = @transform_3, window_bounds = array<i64: 1, 8, 32>}]} {
    %c0 = arith.constant 0 : index
    %c0_0 = arith.constant 0 : index
    %c0_1 = arith.constant 0 : index
    %0 = vector.load %arg1[%c0, %c0_0, %c0_1] : memref<1x8x64xf32, #tpu.memory_space<vmem>>, vector<1x8x64xf32>
    %1 = vector.shape_cast %0 : vector<1x8x64xf32> to vector<8x64xf32>
    %c0_2 = arith.constant 0 : index
    %c0_3 = arith.constant 0 : index
    %c0_4 = arith.constant 0 : index
    %2 = vector.load %arg2[%c0_2, %c0_3, %c0_4] : memref<1x64x32xf32, #tpu.memory_space<vmem>>, vector<1x64x32xf32>
    %3 = vector.shape_cast %2 : vector<1x64x32xf32> to vector<64x32xf32>
    %cst = arith.constant dense<0.000000e+00> : vector<8x32xf32>
    %4 = tpu.matmul %1, %3, %cst {dimension_numbers = #tpu.dot_dimension_numbers<[1], [0], [0], [1], [0, 0, 1, 1], [], []>} : vector<8x64xf32>, vector<64x32xf32>, vector<8x32xf32> -> vector<8x32xf32>
    %c0_5 = arith.constant 0 : index
    %c0_6 = arith.constant 0 : index
    %c0_7 = arith.constant 0 : index
    %5 = vector.load %arg3[%c0_5, %c0_6, %c0_7] : memref<1x8x32xf32, #tpu.memory_space<vmem>>, vector<1x8x32xf32>
    %6 = vector.shape_cast %5 : vector<1x8x32xf32> to vector<8x32xf32>
    %7 = arith.mulf %6, %4 : vector<8x32xf32>
    %c0_8 = arith.constant 0 : index
    %c0_9 = arith.constant 0 : index
    %c0_10 = arith.constant 0 : index
    %8 = vector.load %arg4[%c0_8, %c0_9, %c0_10] : memref<1x8x32xf32, #tpu.memory_space<vmem>>, vector<1x8x32xf32>
    %9 = vector.shape_cast %8 : vector<1x8x32xf32> to vector<8x32xf32>
    %10 = vector.shape_cast %7 : vector<8x32xf32> to vector<1x8x32xf32>
    tpu.vector_store %arg4[%c0_8, %c0_9, %c0_10], %10 {strides = array<i32>} : memref<1x8x32xf32, #tpu.memory_space<vmem>>, vector<1x8x32xf32>,
    return
  }
  func.func @transform_0(%arg0: i32) -> (i32, i32, i32) {
    %c0_i32 = arith.constant 0 : i32
    %c0_i32_0 = arith.constant 0 : i32
    %c0_i32_1 = arith.constant 0 : i32
    return %arg0, %c0_i32, %c0_i32_0 : i32, i32, i32
  }
  func.func @transform_1(%arg0: i32) -> (i32, i32, i32) {
    %c0_i32 = arith.constant 0 : i32
    %c0_i32_0 = arith.constant 0 : i32
    %c0_i32_1 = arith.constant 0 : i32
    return %arg0, %c0_i32, %c0_i32_0 : i32, i32, i32
  }
  func.func @transform_2(%arg0: i32) -> (i32, i32, i32) {
    %c0_i32 = arith.constant 0 : i32
    %c0_i32_0 = arith.constant 0 : i32
    %c0_i32_1 = arith.constant 0 : i32
    return %arg0, %c0_i32, %c0_i32_0 : i32, i32, i32
  }
  func.func @transform_3(%arg0: i32) -> (i32, i32, i32) {
    %c0_i32 = arith.constant 0 : i32
    %c0_i32_0 = arith.constant 0 : i32
    %c0_i32_1 = arith.constant 0 : i32
    return %arg0, %c0_i32, %c0_i32_0 : i32, i32, i32
  }
}

</mosaic_0001>

<llo_original>
// kernel: tpu_custom_call.1
$region0: #{tpu_custom_call.1}
  #allocation0 [shape = 'u32[]', space=smem, size = 0x4, offset = 0x4, fixed_abs, tag = 'smem constant byte address 0x4 - core index']
  #allocation1 [shape = 'u32[72,128]{1,0:T(1,128)}', space=vmem, size = 0x9000, scoped, tag = 'internal scratch']
  %s0 = inlined_call_operand.vmem [shape: f32[2,8,64], index: 0, kind: input, shape index: {}]
  %s1 = inlined_call_operand.vmem [shape: f32[2,64,32], index: 1, kind: input, shape index: {}]
  %s2 = inlined_call_operand.vmem [shape: f32[2,8,32], index: 2, kind: input, shape index: {}]
  %s3 = inlined_call_operand.hbm [shape: f32[2,8,32], index: 3, kind: output, shape index: {}]
  %s4 = sld [smem:[#allocation0]]
  $region45: #{tpu_custom_call.1} parent=0
    _
  %s6 = ssub.s32 1, %s4
  %s7 = scalar_select 0, %s6, %s4
  $region1: #{tpu_custom_call.1} parent=0
    #allocation2 [shape = 'u8[8192]{0}', space=vmem, size = 0x2000, scoped, tag = 'output window, operand 0']
    #allocation3 [shape = 's32[2]{0}', space=sflag, size = 0x8, scoped, tag = 'scoped memory for tpu_custom_call.1']
    %8 = vsyncpa [#allocation3], 0
    %s9 = scalar_lea.sflag [#allocation3], 1
    %10 = vsyncpa %s9, 0
    loop: start=0, step=1, limit=4
    $region2: #{tpu_custom_call.1} parent=1 // loop_pre_header
      _
    $region3: #{tpu_custom_call.1} parent=1 // loop_header
      %s12 = sphi 0, %s16
      %p13 = scmp.ge.s32.totalorder %s12, 4
      %s22 = sphi 0, %s24
      %s25 = sphi 0, %s22
      %s26 = sphi 0, %s25
      %s42 = sphi 0, %s26
      %s48 = sphi 0, %s50
      %s51 = sphi 0, %s48
      %s52 = sphi 0, %s51
      %s68 = sphi 0, %s52
      %s74 = sphi 0, %s76
      %s77 = sphi 0, %s74
      %s78 = sphi 0, %s77
      %s94 = sphi 0, %s78
      %s100 = sphi 0, %s102
      %s103 = sphi 0, %s100
      %s104 = sphi 0, %s103
      %s120 = sphi 0, %s104
    $region4: #{tpu_custom_call.1} parent=1 // loop_header_branch
      %15 = sbr.rel (%p13) target = $region8
    $region5: #{tpu_custom_call.1} parent=1 // loop_body
      %s17 = ssub.s32 %s12, 1
      %s18 = ssub.s32 %s12, 2
      %s19 = sadd.s32 %s12, 1
      %s20 = ssub.s32 %s12, %s19
      %p21 = scmp.eq.s32.totalorder %s20, 0
      %s23 = sadd.s32 %s22, 1
      %s24 = scalar_select %p21, %s22, %s23
      %p27 = pneg %p21
      %p28 = scmp.eq.s32.totalorder %s12, 1
      %p29 = por %p27, %p28
      %p30 = scmp.ne.s32.totalorder %s22, %s25
      %p31 = scmp.eq.s32.totalorder %s12, 0
      %p32 = por %p30, %p31
      %p33 = scmp.ne.s32.totalorder %s22, %s25
      %p34 = scmp.eq.s32.totalorder %s17, 1
      %p35 = por %p33, %p34
      %p36 = scmp.ne.s32.totalorder %s25, %s26
      %p37 = scmp.eq.s32.totalorder %s17, 0
      %p38 = por %p36, %p37
      %p39 = scmp.ne.s32.totalorder %s25, %s26
      %p40 = scmp.eq.s32.totalorder %s18, 1
      %p41 = por %p39, %p40
      %p43 = scmp.ne.s32.totalorder %s26, %s42
      %p44 = scmp.eq.s32.totalorder %s18, 0
      %p45 = por %p43, %p44
      %s46 = ssub.s32 %s12, %s19
      %p47 = scmp.eq.s32.totalorder %s46, 0
      %s49 = sadd.s32 %s48, 1
      %s50 = scalar_select %p47, %s48, %s49
      %p53 = pneg %p47
      %p54 = scmp.eq.s32.totalorder %s12, 1
      %p55 = por %p53, %p54
      %p56 = scmp.ne.s32.totalorder %s48, %s51
      %p57 = scmp.eq.s32.totalorder %s12, 0
      %p58 = por %p56, %p57
      %p59 = scmp.ne.s32.totalorder %s48, %s51
      %p60 = scmp.eq.s32.totalorder %s17, 1
      %p61 = por %p59, %p60
      %p62 = scmp.ne.s32.totalorder %s51, %s52
      %p63 = scmp.eq.s32.totalorder %s17, 0
      %p64 = por %p62, %p63
      %p65 = scmp.ne.s32.totalorder %s51, %s52
      %p66 = scmp.eq.s32.totalorder %s18, 1
      %p67 = por %p65, %p66
      %p69 = scmp.ne.s32.totalorder %s52, %s68
      %p70 = scmp.eq.s32.totalorder %s18, 0
      %p71 = por %p69, %p70
      %s72 = ssub.s32 %s12, %s19
      %p73 = scmp.eq.s32.totalorder %s72, 0
      %s75 = sadd.s32 %s74, 1
      %s76 = scalar_select %p73, %s74, %s75
      %p79 = pneg %p73
      %p80 = scmp.eq.s32.totalorder %s12, 1
      %p81 = por %p79, %p80
      %p82 = scmp.ne.s32.totalorder %s74, %s77
      %p83 = scmp.eq.s32.totalorder %s12, 0
      %p84 = por %p82, %p83
      %p85 = scmp.ne.s32.totalorder %s74, %s77
      %p86 = scmp.eq.s32.totalorder %s17, 1
      %p87 = por %p85, %p86
      %p88 = scmp.ne.s32.totalorder %s77, %s78
      %p89 = scmp.eq.s32.totalorder %s17, 0
      %p90 = por %p88, %p89
      %p91 = scmp.ne.s32.totalorder %s77, %s78
      %p92 = scmp.eq.s32.totalorder %s18, 1
      %p93 = por %p91, %p92
      %p95 = scmp.ne.s32.totalorder %s78, %s94
      %p96 = scmp.eq.s32.totalorder %s18, 0
      %p97 = por %p95, %p96
      %s98 = ssub.s32 %s12, %s19
      %p99 = scmp.eq.s32.totalorder %s98, 0
      %s101 = sadd.s32 %s100, 1
      %s102 = scalar_select %p99, %s100, %s101
      %p105 = pneg %p99
      %p106 = scmp.eq.s32.totalorder %s12, 1
      %p107 = por %p105, %p106
      %p108 = scmp.ne.s32.totalorder %s100, %s103
      %p109 = scmp.eq.s32.totalorder %s12, 0
      %p110 = por %p108, %p109
      %p111 = scmp.ne.s32.totalorder %s100, %s103
      %p112 = scmp.eq.s32.totalorder %s17, 1
      %p113 = por %p111, %p112
      %p114 = scmp.ne.s32.totalorder %s103, %s104
      %p115 = scmp.eq.s32.totalorder %s17, 0
      %p116 = por %p114, %p115
      %p117 = scmp.ne.s32.totalorder %s103, %s104
      %p118 = scmp.eq.s32.totalorder %s18, 1
      %p119 = por %p117, %p118
      %p121 = scmp.ne.s32.totalorder %s104, %s120
      %p122 = scmp.eq.s32.totalorder %s18, 0
      %p123 = por %p121, %p122
      %p124 = scmp.le.s32.totalorder 1, %s12
      %p125 = scmp.lt.s32.totalorder %s12, 3
      %p126 = pnand %p124, %p125
      %p127 = pneg %p126
      // Predicated region
      $region9: #{tpu_custom_call.1} parent=5 // pred_check
        _
      $region10: #{tpu_custom_call.1} parent=5 // pred_check_branch
        %129 = sbr.rel (%p126) target = $region12
      $region11: #{tpu_custom_call.1} parent=5 // pred_region
        %s130 = ssub.s32 %s12, 1
      $region12: #{tpu_custom_call.1} parent=5 // pred_fallthru
        _
      %p131 = scmp.lt.s32.totalorder %s12, 2
      // Predicated region
      $region13: #{tpu_custom_call.1} parent=5 // pred_check
        %p132 = pneg %p131
      $region14: #{tpu_custom_call.1} parent=5 // pred_check_branch
        %134 = sbr.rel (%p132) target = $region16
      $region15: #{tpu_custom_call.1} parent=5 // pred_region
        // Predicated region
        $region17: #{tpu_custom_call.1} parent=15 // pred_check
          %p135 = pneg %p32
        $region18: #{tpu_custom_call.1} parent=15 // pred_check_branch
          %137 = sbr.rel (%p135) target = $region20
        $region19: #{tpu_custom_call.1} parent=15 // pred_region
          %p138 = scmp.lt.s32.totalorder %s12, 1
          %s139 = scalar_select %p138, %s12, 1
          %s140 = smul.addr %s139, 8
          %s141 = scalar_lea.vmem %s0, %s140
        $region20: #{tpu_custom_call.1} parent=15 // pred_fallthru
          _
        // Predicated region
        $region21: #{tpu_custom_call.1} parent=15 // pred_check
          %p142 = pneg %p58
        $region22: #{tpu_custom_call.1} parent=15 // pred_check_branch
          %144 = sbr.rel (%p142) target = $region24
        $region23: #{tpu_custom_call.1} parent=15 // pred_region
          %p145 = scmp.lt.s32.totalorder %s12, 1
          %s146 = scalar_select %p145, %s12, 1
          %s147 = smul.addr %s146, 8
          %s148 = smul.addr %s147, 8
          %s149 = scalar_lea.vmem %s1, %s148
        $region24: #{tpu_custom_call.1} parent=15 // pred_fallthru
          _
        // Predicated region
        $region25: #{tpu_custom_call.1} parent=15 // pred_check
          %p150 = pneg %p84
        $region26: #{tpu_custom_call.1} parent=15 // pred_check_branch
          %152 = sbr.rel (%p150) target = $region28
        $region27: #{tpu_custom_call.1} parent=15 // pred_region
          %p153 = scmp.lt.s32.totalorder %s12, 1
          %s154 = scalar_select %p153, %s12, 1
          %s155 = smul.addr %s154, 8
          %s156 = scalar_lea.vmem %s2, %s155
        $region28: #{tpu_custom_call.1} parent=15 // pred_fallthru
          _
      $region16: #{tpu_custom_call.1} parent=5 // pred_fallthru
        _
      %p157 = scmp.le.s32.totalorder 1, %s12
      %p158 = scmp.lt.s32.totalorder %s12, 3
      %p159 = pnand %p157, %p158
      %p160 = pneg %p159
      // Predicated region
      $region29: #{tpu_custom_call.1} parent=5 // pred_check
        _
      $region30: #{tpu_custom_call.1} parent=5 // pred_check_branch
        %162 = sbr.rel (%p159) target = $region32
      $region31: #{tpu_custom_call.1} parent=5 // pred_region
        %s163 = ssub.s32 %s12, 1
        %p164 = scmp.lt.s32.totalorder %s17, 1
        %s165 = scalar_select %p164, %s17, 1
        %s166 = smul.addr %s165, 8
        %s167 = scalar_lea.vmem %s0, %s166
        %p168 = pneg %p38
        %p169 = pneg %p35
        %p170 = scmp.lt.s32.totalorder %s17, 1
        %s171 = scalar_select %p170, %s17, 1
        %s172 = smul.addr %s171, 8
        %s173 = smul.addr %s172, 8
        %s174 = scalar_lea.vmem %s1, %s173
        %p175 = pneg %p64
        %p176 = pneg %p61
        %p177 = scmp.lt.s32.totalorder %s17, 1
        %s178 = scalar_select %p177, %s17, 1
        %s179 = smul.addr %s178, 8
        %s180 = scalar_lea.vmem %s2, %s179
        %p181 = pneg %p90
        %p182 = pneg %p87
        %p183 = pneg %p116
        %p184 = pneg %p113
        %s185 = sand.u32 %s103, 1
        %s186 = scalar_lea.sflag [#allocation3], %s185
        %s187 = sand.u32 %s103, 1
        %s188 = smul.addr %s187, 8
        %s189 = scalar_lea.vmem [#allocation2], %s188
        %p190 = scmp.lt.s32.totalorder %s17, 1
        %s191 = scalar_select %p190, %s17, 1
        %s192 = smul.addr %s191, 8
        %s193 = scalar_lea.vmem %s0, %s192
        %p194 = scmp.lt.s32.totalorder %s17, 1
        %s195 = scalar_select %p194, %s17, 1
        %s196 = smul.addr %s195, 8
        %s197 = smul.addr %s196, 8
        %s198 = scalar_lea.vmem %s1, %s197
        %p199 = scmp.lt.s32.totalorder %s17, 1
        %s200 = scalar_select %p199, %s17, 1
        %s201 = smul.addr %s200, 8
        %s202 = scalar_lea.vmem %s2, %s201
        %v203 = vld [vmem:[%s193] sm:$0xff]
        %v204 = vld [vmem:[%s198] sm:$0xff]
        %v205 = vld [vmem:[%s198 + $0x8] sm:$0xff]
        %v206 = vld [vmem:[%s198 + $0x10] sm:$0xff]
        %v207 = vld [vmem:[%s198 + $0x18] sm:$0xff]
        %v208 = vld [vmem:[%s198 + $0x20] sm:$0xff]
        %v209 = vld [vmem:[%s198 + $0x28] sm:$0xff]
        %v210 = vld [vmem:[%s198 + $0x30] sm:$0xff]
        %v211 = vld [vmem:[%s198 + $0x38] sm:$0xff]
        %vm212 = vcmask 523264
        %v214 = vsel %vm212, %v203, 0
        %216 = vmatpush.msra.mxu0 0.0
        %217 = vmatpush.msra.mxu0 0.0
        %218 = vmatpush.msra.mxu0 0.0
        %219 = vmatpush.msra.mxu0 0.0
        %220 = vmatpush.msra.mxu0 0.0
        %221 = vmatpush.msra.mxu0 0.0
        %222 = vmatpush.msra.mxu0 0.0
        %223 = vmatpush.msra.mxu0 0.0
        %224 = vmatpush.msra.mxu0 %v211
        %225 = vmatpush.msra.mxu0 %v210
        %226 = vmatpush.msra.mxu0 %v209
        %227 = vmatpush.msra.mxu0 %v208
        %228 = vmatpush.msra.mxu0 %v207
        %229 = vmatpush.msra.mxu0 %v206
        %230 = vmatpush.msra.mxu0 %v205
        %231 = vmatpush.msra.mxu0 %v204
        %232 = vmatmul.f32.gmra.mxu0 %v214
        %v233 = vpop.f32.mrf.mxu0
        %v234 = vadd.f32 0.0, %v233
        %235 = vdwg.mxu0
        %v236 = vld [vmem:[%s202] sm:$0xff]
        %v237 = vmul.f32 %v236, %v234
        %vm238 = vcmask 261120
        %239 = vst.msk [vmem:[%s189] sm:$0xff] %vm238, %v237
        %s240 = sand.u32 %s103, 1
        %s241 = scalar_lea.sflag [#allocation3], %s240
        %s242 = sand.u32 %s103, 1
        %s243 = smul.addr %s242, 8
        %s244 = scalar_lea.vmem [#allocation2], %s243
        // Predicated region
        $region33: #{tpu_custom_call.1} parent=31 // pred_check
          %p245 = pneg %p113
        $region34: #{tpu_custom_call.1} parent=31 // pred_check_branch
          %247 = sbr.rel (%p245) target = $region36
        $region35: #{tpu_custom_call.1} parent=31 // pred_region
          %249 = vsyncadd %s241, 0
          %s250 = smul.addr %s17, 8
          %s251 = scalar_lea.hbm %s3, %s250
          %s253 = sshll.u32 %s244, 4
          %s254 = int_to_ptr.vmem [resolvable:$true] %s253
          %s255 = sshll.u32 %s251, 4
          %s256 = int_to_ptr.hbm [resolvable:$true] %s255
          %258 = dma.vmem_to_hbm [thread:$0]  %s254, 128, %s256, %s241
        $region36: #{tpu_custom_call.1} parent=31 // pred_fallthru
          _
      $region32: #{tpu_custom_call.1} parent=5 // pred_fallthru
        _
      %p259 = scmp.le.s32.totalorder 2, %s12
      // Predicated region
      $region37: #{tpu_custom_call.1} parent=5 // pred_check
        %p260 = pneg %p259
      $region38: #{tpu_custom_call.1} parent=5 // pred_check_branch
        %262 = sbr.rel (%p260) target = $region40
      $region39: #{tpu_custom_call.1} parent=5 // pred_region
        %s263 = ssub.s32 %s12, 2
        // Predicated region
        $region41: #{tpu_custom_call.1} parent=39 // pred_check
          %p264 = pneg %p119
        $region42: #{tpu_custom_call.1} parent=39 // pred_check_branch
          %266 = sbr.rel (%p264) target = $region44
        $region43: #{tpu_custom_call.1} parent=39 // pred_region
          %s267 = sand.u32 %s104, 1
          %s268 = scalar_lea.sflag [#allocation3], %s267
          %s269 = sand.u32 %s104, 1
          %s270 = smul.addr %s269, 8
          %s271 = scalar_lea.vmem [#allocation2], %s270
          %273 = dma.done %s268, 128
        $region44: #{tpu_custom_call.1} parent=39 // pred_fallthru
          _
      $region40: #{tpu_custom_call.1} parent=5 // pred_fallthru
        _
    $region6: #{tpu_custom_call.1} parent=1 // loop_footer
      %s16 = sadd.s32 1, %s12
    $region7: #{tpu_custom_call.1} parent=1 // loop_footer_branch
      %11 = sbr.rel target = $region3
    $region8: #{tpu_custom_call.1} parent=1 // loop_exit
      _
    %274 = vsyncpa [#allocation3], 1
    %s275 = scalar_lea.sflag [#allocation3], 1
    %276 = vsyncpa %s275, 1

</llo_original>
